<compile_context>
chip_gen: v7x
topology: tpu7x:2x2x1
jax: 0.10.0
libtpu: 0.0.40
codegen_flags: <defaults>
</compile_context>

<pallas_src>
import jax
import jax.numpy as jnp
from jax.experimental import pallas as pl
from jax.experimental.pallas import tpu as pltpu


def _make_critic_kernel(num_hidden):
    """Kernel for an MLP with `num_hidden` tanh hidden layers + linear(1) head.

    Ref order: x, (w1t, b1), (w2t, b2), ..., (w_head_row, b_head), out.
      x        : (TB, S)            -- natural batch-major tile
      w_k^T    : (H_k, H_{k-1})     -- weights pre-transposed to (out, in)
      b_k      : (H_k, 1)           -- biases as lane-broadcast columns
      head w   : (1, H_last) row, head b: (1, 1)
      out      : (1, TB)            -- lane-dense row of state values
    """

    def kernel(*refs):
        x_ref, o_ref = refs[0], refs[-1]
        params = refs[1:-1]

        # First matmul contracts against x's feature axis (rhs-transposed form),
        # putting the batch on the 128-lane axis for the rest of the network:
        #   (H1, S) . (TB, S)^T -> (H1, TB)
        a = jax.lax.dot_general(
            params[0][...], x_ref[...],
            dimension_numbers=(((1,), (1,)), ((), ())),
            preferred_element_type=jnp.float32,
        ) + params[1][...]

        if num_hidden == 0:           # degenerate: no hidden layers, head only
            o_ref[...] = a.astype(o_ref.dtype)
            return

        h = jnp.tanh(a)
        # Remaining hidden layers: canonical (H_k, H_{k-1}) @ (H_{k-1}, TB).
        for l in range(1, num_hidden):
            h = jnp.tanh(
                jnp.dot(params[2 * l][...], h, preferred_element_type=jnp.float32)
                + params[2 * l + 1][...]
            )
        # Value head: (1, H_last) @ (H_last, TB) -> (1, TB), lane-dense store.
        v = (jnp.dot(params[-2][...], h, preferred_element_type=jnp.float32)
             + params[-1][...])
        o_ref[...] = v.astype(o_ref.dtype)

    return kernel


def critic_forward(x, params, *, block_b=1024):
    """Critic forward pass: (B, state_dim) -> (B, 1) state values.

    x: (B, state_dim) float32
    params: dict with w1 (S,H1), b1 (1,H1), ..., w_out (H_last,1), b_out (1,1)
            (weights stored (in, out): y = x @ W + b, matching nn.Linear math)
    """
    B, S = x.shape
    n_layers = len(params) // 2          # hidden layers + output head
    num_hidden = n_layers - 1

    # One-time tiny reshapes: weights -> (out, in) rows, biases -> (out, 1) cols.
    flat = []
    dims = [S]
    for i in range(1, n_layers + 1):
        w = params[f"w{i}"]              # (in, out)
        b = params[f"b{i}"]              # (1, out)
        dims.append(w.shape[1])
        flat.append(w.T)                 # (out, in)
        flat.append(b.reshape(-1, 1))    # (out, 1)

    # Tile the batch.  Small batches run as a single full-extent tile; large
    # batches stream (block_b, S) tiles with a ragged last tile (no pad copy).
    if B <= block_b:
        tb, num_tiles = B, 1
    else:
        tb = max(128, (block_b // 128) * 128)   # lane/sublane aligned tiles
        num_tiles = pl.cdiv(B, tb)

    in_specs = [pl.BlockSpec((tb, S), lambda i: (i, 0))]     # x: streamed tiles
    for p in flat:                                           # params: resident,
        in_specs.append(pl.BlockSpec(p.shape, lambda i: (0, 0)))  # DMA'd once

    flops = 2 * B * sum(dims[i] * dims[i + 1] for i in range(n_layers))
    trans = B * sum(dims[1:-1])
    bytes_acc = 4 * (B * S + B
                     + sum(dims[i] * dims[i + 1] + dims[i + 1]
                           for i in range(n_layers)))

    out_row = pl.pallas_call(
        _make_critic_kernel(num_hidden),
        out_shape=jax.ShapeDtypeStruct((1, B), jnp.float32),
        grid=(num_tiles,),
        in_specs=in_specs,
        out_specs=pl.BlockSpec((1, tb), lambda i: (0, i)),   # lane-dense values
        compiler_params=pltpu.CompilerParams(
            dimension_semantics=("parallel",),               # megacore on v7x
        ),
        cost_estimate=pl.CostEstimate(
            flops=flops, transcendentals=trans, bytes_accessed=bytes_acc),
    )(x, *flat)

    # Back to the PyTorch layout: (B, 1) column of state values.
    return out_row.reshape(B, 1)


def init_params(state_dim, hidden_units, key):
    """Deterministic parameter initialization (synthetic, not a checkpoint)."""
    dims = [state_dim] + list(hidden_units) + [1]
    keys = jax.random.split(key, 2 * (len(dims) - 1))
    params = {}
    for i, (din, dout) in enumerate(zip(dims[:-1], dims[1:])):
        scale = 1.0 / jnp.sqrt(din)
        params[f"w{i + 1}"] = jax.random.uniform(
            keys[2 * i], (din, dout), jnp.float32, -scale, scale)
        params[f"b{i + 1}"] = jax.random.uniform(
            keys[2 * i + 1], (1, dout), jnp.float32, -scale, scale)
    return params


def critic_reference(x, params):
    """Pure-JAX reference for correctness checking."""
    n_layers = len(params) // 2
    h = x
    for i in range(1, n_layers):
        h = jnp.tanh(h @ params[f"w{i}"] + params[f"b{i}"])
    return h @ params[f"w{n_layers}"] + params[f"b{n_layers}"]


if __name__ == "__main__":
    key = jax.random.PRNGKey(0)
    k_x, k_p = jax.random.split(key)

    batch = 500                 # deliberately not a multiple of 8 or 128
    state_dim = 16
    hidden_units = [32, 32]

    x = jax.random.normal(k_x, (batch, state_dim), dtype=jnp.float32)
    params = init_params(state_dim, hidden_units, k_p)
    ref = critic_reference(x, params)

    # Path 1: whole batch as one resident tile (small-B fast path, 1 grid step).
    out_single = jax.block_until_ready(critic_forward(x, params))
    assert out_single.shape == (batch, 1), out_single.shape
    assert jnp.allclose(out_single, ref, atol=1e-5, rtol=1e-5), (
        float(jnp.max(jnp.abs(out_single - ref))))

    # Path 2: streamed batch tiles with a ragged last tile (large-B path).
    out_tiled = jax.block_until_ready(critic_forward(x, params, block_b=128))
    assert out_tiled.shape == (batch, 1), out_tiled.shape
    assert jnp.allclose(out_tiled, ref, atol=1e-5, rtol=1e-5), (
        float(jnp.max(jnp.abs(out_tiled - ref))))

    print("KERNEL_OK")
</pallas_src>

<mosaic_0001>
module attributes {stable_mosaic.version = 11 : i64} {
  func.func @kernel(%arg0: i32, %arg1: memref<500x16xf32, #tpu.memory_space<vmem>>, %arg2: memref<32x16xf32, #tpu.memory_space<vmem>>, %arg3: memref<32x1xf32, #tpu.memory_space<vmem>>, %arg4: memref<32x32xf32, #tpu.memory_space<vmem>>, %arg5: memref<32x1xf32, #tpu.memory_space<vmem>>, %arg6: memref<1x32xf32, #tpu.memory_space<vmem>>, %arg7: memref<1x1xf32, #tpu.memory_space<vmem>>, %arg8: memref<1x500xf32, #tpu.memory_space<vmem>>) attributes {dimension_semantics = [#tpu.dimension_semantics<parallel>], iteration_bounds = array<i64: 1>, scalar_prefetch = 0 : i64, scratch_operands = 0 : i64, tpu.core_type = #tpu.core_type<tc>, window_params = [{transform_indices = @transform_0, window_bounds = array<i64: 500, 16>}, {pipeline_mode = #tpu.pipeline_mode<synchronous>, transform_indices = @transform_1, window_bounds = array<i64: 32, 16>}, {pipeline_mode = #tpu.pipeline_mode<synchronous>, transform_indices = @transform_2, window_bounds = array<i64: 32, 1>}, {pipeline_mode = #tpu.pipeline_mode<synchronous>, transform_indices = @transform_3, window_bounds = array<i64: 32, 32>}, {pipeline_mode = #tpu.pipeline_mode<synchronous>, transform_indices = @transform_4, window_bounds = array<i64: 32, 1>}, {pipeline_mode = #tpu.pipeline_mode<synchronous>, transform_indices = @transform_5, window_bounds = array<i64: 1, 32>}, {pipeline_mode = #tpu.pipeline_mode<synchronous>, transform_indices = @transform_6, window_bounds = array<i64: 1, 1>}, {transform_indices = @transform_7, window_bounds = array<i64: 1, 500>}]} {
    %c0 = arith.constant 0 : index
    %c0_0 = arith.constant 0 : index
    %0 = vector.load %arg2[%c0, %c0_0] : memref<32x16xf32, #tpu.memory_space<vmem>>, vector<32x16xf32>
    %c0_1 = arith.constant 0 : index
    %c0_2 = arith.constant 0 : index
    %1 = vector.load %arg1[%c0_1, %c0_2] : memref<500x16xf32, #tpu.memory_space<vmem>>, vector<500x16xf32>
    %cst = arith.constant dense<0.000000e+00> : vector<32x500xf32>
    %2 = tpu.matmul %0, %1, %cst {dimension_numbers = #tpu.dot_dimension_numbers<[1], [1], [0], [0], [0, 0, 1, 0], [], []>} : vector<32x16xf32>, vector<500x16xf32>, vector<32x500xf32> -> vector<32x500xf32>
    %c0_3 = arith.constant 0 : index
    %c0_4 = arith.constant 0 : index
    %3 = vector.load %arg3[%c0_3, %c0_4] : memref<32x1xf32, #tpu.memory_space<vmem>>, vector<32x1xf32>
    %4 = vector.broadcast %3 : vector<32x1xf32> to vector<32x500xf32>
    %5 = arith.addf %2, %4 : vector<32x500xf32>
    %6 = math.tanh %5 : vector<32x500xf32>
    %c0_5 = arith.constant 0 : index
    %c0_6 = arith.constant 0 : index
    %7 = vector.load %arg4[%c0_5, %c0_6] : memref<32x32xf32, #tpu.memory_space<vmem>>, vector<32x32xf32>
    %cst_7 = arith.constant dense<0.000000e+00> : vector<32x500xf32>
    %8 = tpu.matmul %7, %6, %cst_7 {dimension_numbers = #tpu.dot_dimension_numbers<[1], [0], [0], [1], [0, 0, 1, 1], [], []>} : vector<32x32xf32>, vector<32x500xf32>, vector<32x500xf32> -> vector<32x500xf32>
    %c0_8 = arith.constant 0 : index
    %c0_9 = arith.constant 0 : index
    %9 = vector.load %arg5[%c0_8, %c0_9] : memref<32x1xf32, #tpu.memory_space<vmem>>, vector<32x1xf32>
    %10 = vector.broadcast %9 : vector<32x1xf32> to vector<32x500xf32>
    %11 = arith.addf %8, %10 : vector<32x500xf32>
    %12 = math.tanh %11 : vector<32x500xf32>
    %c0_10 = arith.constant 0 : index
    %c0_11 = arith.constant 0 : index
    %13 = vector.load %arg6[%c0_10, %c0_11] : memref<1x32xf32, #tpu.memory_space<vmem>>, vector<1x32xf32>
    %cst_12 = arith.constant dense<0.000000e+00> : vector<1x500xf32>
    %14 = tpu.matmul %13, %12, %cst_12 {dimension_numbers = #tpu.dot_dimension_numbers<[1], [0], [0], [1], [0, 0, 1, 1], [], []>} : vector<1x32xf32>, vector<32x500xf32>, vector<1x500xf32> -> vector<1x500xf32>
    %c0_13 = arith.constant 0 : index
    %c0_14 = arith.constant 0 : index
    %15 = vector.load %arg7[%c0_13, %c0_14] : memref<1x1xf32, #tpu.memory_space<vmem>>, vector<1x1xf32>
    %16 = vector.broadcast %15 : vector<1x1xf32> to vector<1x500xf32>
    %17 = arith.addf %14, %16 : vector<1x500xf32>
    %c0_15 = arith.constant 0 : index
    %c0_16 = arith.constant 0 : index
    %18 = vector.load %arg8[%c0_15, %c0_16] : memref<1x500xf32, #tpu.memory_space<vmem>>, vector<1x500xf32>
    tpu.vector_store %arg8[%c0_15, %c0_16], %17 {strides = array<i32>} : memref<1x500xf32, #tpu.memory_space<vmem>>, vector<1x500xf32>,
    return
  }
  func.func @transform_0(%arg0: i32) -> (i32, i32) {
    %c0_i32 = arith.constant 0 : i32
    %c0_i32_0 = arith.constant 0 : i32
    return %arg0, %c0_i32 : i32, i32
  }
  func.func @transform_1(%arg0: i32) -> (i32, i32) {
    %c0_i32 = arith.constant 0 : i32
    %c0_i32_0 = arith.constant 0 : i32
    %c0_i32_1 = arith.constant 0 : i32
    return %c0_i32, %c0_i32_0 : i32, i32
  }
  func.func @transform_2(%arg0: i32) -> (i32, i32) {
    %c0_i32 = arith.constant 0 : i32
    %c0_i32_0 = arith.constant 0 : i32
    %c0_i32_1 = arith.constant 0 : i32
    return %c0_i32, %c0_i32_0 : i32, i32
  }
  func.func @transform_3(%arg0: i32) -> (i32, i32) {
    %c0_i32 = arith.constant 0 : i32
    %c0_i32_0 = arith.constant 0 : i32
    %c0_i32_1 = arith.constant 0 : i32
    return %c0_i32, %c0_i32_0 : i32, i32
  }
  func.func @transform_4(%arg0: i32) -> (i32, i32) {
    %c0_i32 = arith.constant 0 : i32
    %c0_i32_0 = arith.constant 0 : i32
    %c0_i32_1 = arith.constant 0 : i32
    return %c0_i32, %c0_i32_0 : i32, i32
  }
  func.func @transform_5(%arg0: i32) -> (i32, i32) {
    %c0_i32 = arith.constant 0 : i32
    %c0_i32_0 = arith.constant 0 : i32
    %c0_i32_1 = arith.constant 0 : i32
    return %c0_i32, %c0_i32_0 : i32, i32
  }
  func.func @transform_6(%arg0: i32) -> (i32, i32) {
    %c0_i32 = arith.constant 0 : i32
    %c0_i32_0 = arith.constant 0 : i32
    %c0_i32_1 = arith.constant 0 : i32
    return %c0_i32, %c0_i32_0 : i32, i32
  }
  func.func @transform_7(%arg0: i32) -> (i32, i32) {
    %c0_i32 = arith.constant 0 : i32
    %c0_i32_0 = arith.constant 0 : i32
    return %c0_i32, %arg0 : i32, i32
  }
}

</mosaic_0001>

<llo_original>
// kernel: tpu_custom_call.1
$region0: #{tpu_custom_call.1}
  #allocation0 [shape = 'u32[]', space=smem, size = 0x4, offset = 0x4, fixed_abs, tag = 'smem constant byte address 0x4 - core index']
  #allocation1 [shape = 'u32[144,128]{1,0:T(1,128)}', space=vmem, size = 0x12000, scoped, tag = 'internal scratch']
  #allocation2 [shape = 'f32[1,1]{1,0:T(1,128)S(1)}', space=vmem, size = 0x200, scoped, tag = 'scoped memory for tpu_custom_call.1']
  %s0 = inlined_call_operand.vmem [shape: f32[500,16], index: 0, kind: input, shape index: {}]
  %s1 = inlined_call_operand.vmem [shape: f32[32,16], index: 1, kind: input, shape index: {}]
  %s2 = inlined_call_operand.vmem [shape: f32[32,1], index: 2, kind: input, shape index: {}]
  %s3 = inlined_call_operand.vmem [shape: f32[32,32], index: 3, kind: input, shape index: {}]
  %s4 = inlined_call_operand.vmem [shape: f32[32,1], index: 4, kind: input, shape index: {}]
  %s5 = inlined_call_operand.vmem [shape: f32[1,32], index: 5, kind: input, shape index: {}]
  %s6 = inlined_call_operand.<no memory space> [shape: f32[1,1], index: 6, kind: input, shape index: {}]
  %s7 = inlined_call_operand.hbm [shape: f32[1,500], index: 7, kind: output, shape index: {}]
  %s8 = sld [smem:[#allocation0]]
  $region38: #{tpu_custom_call.1} parent=0
    _
  %s10 = ssub.s32 1, %s8
  %s11 = scalar_select 0, %s10, %s8
  %v12 = vstv %s6
  %13 = vst [vmem:[#allocation2] sm:$0x1] %v12
  $region1: #{tpu_custom_call.1} parent=0
    #allocation3 [shape = 'u8[2048]{0}', space=vmem, size = 0x800, scoped, tag = 'output window, operand 0, single buffered']
    #allocation4 [shape = 's32[1]{0}', space=sflag, size = 0x4, scoped, tag = 'scoped memory for tpu_custom_call.1']
    %14 = vsyncpa [#allocation4], 0
    // Predicated region
    $region2: #{tpu_custom_call.1} parent=1 // pred_check
      _
    $region3: #{tpu_custom_call.1} parent=1 // pred_check_branch
      %16 = sbr.rel (0) target = $region5
    $region4: #{tpu_custom_call.1} parent=1 // pred_region
      _
    $region5: #{tpu_custom_call.1} parent=1 // pred_fallthru
      _
    // Predicated region
    $region6: #{tpu_custom_call.1} parent=1 // pred_check
      _
    $region7: #{tpu_custom_call.1} parent=1 // pred_check_branch
      %18 = sbr.rel (0) target = $region9
    $region8: #{tpu_custom_call.1} parent=1 // pred_region
      _
    $region9: #{tpu_custom_call.1} parent=1 // pred_fallthru
      _
    // Predicated region
    $region10: #{tpu_custom_call.1} parent=1 // pred_check
      _
    $region11: #{tpu_custom_call.1} parent=1 // pred_check_branch
      %20 = sbr.rel (0) target = $region13
    $region12: #{tpu_custom_call.1} parent=1 // pred_region
      _
    $region13: #{tpu_custom_call.1} parent=1 // pred_fallthru
      _
    // Predicated region
    $region14: #{tpu_custom_call.1} parent=1 // pred_check
      _
    $region15: #{tpu_custom_call.1} parent=1 // pred_check_branch
      %22 = sbr.rel (0) target = $region17
    $region16: #{tpu_custom_call.1} parent=1 // pred_region
      _
    $region17: #{tpu_custom_call.1} parent=1 // pred_fallthru
      _
    // Predicated region
    $region18: #{tpu_custom_call.1} parent=1 // pred_check
      _
    $region19: #{tpu_custom_call.1} parent=1 // pred_check_branch
      %24 = sbr.rel (0) target = $region21
    $region20: #{tpu_custom_call.1} parent=1 // pred_region
      _
    $region21: #{tpu_custom_call.1} parent=1 // pred_fallthru
      _
    // Predicated region
    $region22: #{tpu_custom_call.1} parent=1 // pred_check
      _
    $region23: #{tpu_custom_call.1} parent=1 // pred_check_branch
      %26 = sbr.rel (0) target = $region25
    $region24: #{tpu_custom_call.1} parent=1 // pred_region
      _
    $region25: #{tpu_custom_call.1} parent=1 // pred_fallthru
      _
    // Predicated region
    $region26: #{tpu_custom_call.1} parent=1 // pred_check
      _
    $region27: #{tpu_custom_call.1} parent=1 // pred_check_branch
      %28 = sbr.rel (0) target = $region29
    $region28: #{tpu_custom_call.1} parent=1 // pred_region
      _
    $region29: #{tpu_custom_call.1} parent=1 // pred_fallthru
      _
    %v29 = vld [vmem:[%s1] sm:$0xff]
    %v30 = vld [vmem:[%s1 + $0x8] sm:$0xff]
    %v31 = vld [vmem:[%s1 + $0x10] sm:$0xff]
    %v32 = vld [vmem:[%s1 + $0x18] sm:$0xff]
    %v33 = vld [vmem:[%s0] sm:$0xff]
    %v34 = vld [vmem:[%s0 + $0x8] sm:$0xff]
    %v35 = vld [vmem:[%s0 + $0x10] sm:$0xff]
    %v36 = vld [vmem:[%s0 + $0x18] sm:$0xff]
    %v37 = vld [vmem:[%s0 + $0x20] sm:$0xff]
    %v38 = vld [vmem:[%s0 + $0x28] sm:$0xff]
    %v39 = vld [vmem:[%s0 + $0x30] sm:$0xff]
    %v40 = vld [vmem:[%s0 + $0x38] sm:$0xff]
    %v41 = vld [vmem:[%s0 + $0x40] sm:$0xff]
    %v42 = vld [vmem:[%s0 + $0x48] sm:$0xff]
    %v43 = vld [vmem:[%s0 + $0x50] sm:$0xff]
    %v44 = vld [vmem:[%s0 + $0x58] sm:$0xff]
    %v45 = vld [vmem:[%s0 + $0x60] sm:$0xff]
    %v46 = vld [vmem:[%s0 + $0x68] sm:$0xff]
    %v47 = vld [vmem:[%s0 + $0x70] sm:$0xff]
    %v48 = vld [vmem:[%s0 + $0x78] sm:$0xff]
    %v49 = vld [vmem:[%s0 + $0x80] sm:$0xff]
    %v50 = vld [vmem:[%s0 + $0x88] sm:$0xff]
    %v51 = vld [vmem:[%s0 + $0x90] sm:$0xff]
    %v52 = vld [vmem:[%s0 + $0x98] sm:$0xff]
    %v53 = vld [vmem:[%s0 + $0xa0] sm:$0xff]
    %v54 = vld [vmem:[%s0 + $0xa8] sm:$0xff]
    %v55 = vld [vmem:[%s0 + $0xb0] sm:$0xff]
    %v56 = vld [vmem:[%s0 + $0xb8] sm:$0xff]
    %v57 = vld [vmem:[%s0 + $0xc0] sm:$0xff]
    %v58 = vld [vmem:[%s0 + $0xc8] sm:$0xff]
    %v59 = vld [vmem:[%s0 + $0xd0] sm:$0xff]
    %v60 = vld [vmem:[%s0 + $0xd8] sm:$0xff]
    %v61 = vld [vmem:[%s0 + $0xe0] sm:$0xff]
    %v62 = vld [vmem:[%s0 + $0xe8] sm:$0xff]
    %v63 = vld [vmem:[%s0 + $0xf0] sm:$0xff]
    %v64 = vld [vmem:[%s0 + $0xf8] sm:$0xff]
    %v65 = vld [vmem:[%s0 + $0x100] sm:$0xff]
    %v66 = vld [vmem:[%s0 + $0x108] sm:$0xff]
    %v67 = vld [vmem:[%s0 + $0x110] sm:$0xff]
    %v68 = vld [vmem:[%s0 + $0x118] sm:$0xff]
    %v69 = vld [vmem:[%s0 + $0x120] sm:$0xff]
    %v70 = vld [vmem:[%s0 + $0x128] sm:$0xff]
    %v71 = vld [vmem:[%s0 + $0x130] sm:$0xff]
    %v72 = vld [vmem:[%s0 + $0x138] sm:$0xff]
    %v73 = vld [vmem:[%s0 + $0x140] sm:$0xff]
    %v74 = vld [vmem:[%s0 + $0x148] sm:$0xff]
    %v75 = vld [vmem:[%s0 + $0x150] sm:$0xff]
    %v76 = vld [vmem:[%s0 + $0x158] sm:$0xff]
    %v77 = vld [vmem:[%s0 + $0x160] sm:$0xff]
    %v78 = vld [vmem:[%s0 + $0x168] sm:$0xff]
    %v79 = vld [vmem:[%s0 + $0x170] sm:$0xff]
    %v80 = vld [vmem:[%s0 + $0x178] sm:$0xff]
    %v81 = vld [vmem:[%s0 + $0x180] sm:$0xff]
    %v82 = vld [vmem:[%s0 + $0x188] sm:$0xff]
    %v83 = vld [vmem:[%s0 + $0x190] sm:$0xff]
    %v84 = vld [vmem:[%s0 + $0x198] sm:$0xff]
    %v85 = vld [vmem:[%s0 + $0x1a0] sm:$0xff]
    %v86 = vld [vmem:[%s0 + $0x1a8] sm:$0xff]
    %v87 = vld [vmem:[%s0 + $0x1b0] sm:$0xff]
    %v88 = vld [vmem:[%s0 + $0x1b8] sm:$0xff]
    %v89 = vld [vmem:[%s0 + $0x1c0] sm:$0xff]
    %v90 = vld [vmem:[%s0 + $0x1c8] sm:$0xff]
    %v91 = vld [vmem:[%s0 + $0x1d0] sm:$0xff]
    %v92 = vld [vmem:[%s0 + $0x1d8] sm:$0xff]
    %v93 = vld [vmem:[%s0 + $0x1e0] sm:$0xff]
    %v94 = vld [vmem:[%s0 + $0x1e8] sm:$0xff]
    %v95 = vld [vmem:[%s0 + $0x1f0] sm:$0xf]
    %v96 = vld [vmem:[%s2] sm:$0xff]
    %v97 = vld [vmem:[%s2 + $0x8] sm:$0xff]
    %v98 = vld [vmem:[%s2 + $0x10] sm:$0xff]
    %v99 = vld [vmem:[%s2 + $0x18] sm:$0xff]
    %101 = vset.pattern.permute.xlu0 0
    %102 = vperm.xlu0 %101, %v96
    %v103 = vpop.permute.xlu0 %102
    %106 = vset.pattern.permute.xlu0 0
    %107 = vperm.xlu0 %106, %v97
    %v108 = vpop.permute.xlu0 %107
    %111 = vset.pattern.permute.xlu0 0
    %112 = vperm.xlu0 %111, %v98
    %v113 = vpop.permute.xlu0 %112
    %116 = vset.pattern.permute.xlu0 0
    %117 = vperm.xlu0 %116, %v99
    %v118 = vpop.permute.xlu0 %117
    %vm120 = vcmask 130048
    %v122 = vsel %vm120, %v29, 0
    %v125 = vsel %vm120, %v30, 0
    %v128 = vsel %vm120, %v31, 0
    %v131 = vsel %vm120, %v32, 0
    %v134 = vsel %vm120, %v33, 0
    %v137 = vsel %vm120, %v34, 0
    %v140 = vsel %vm120, %v35, 0
    %v143 = vsel %vm120, %v36, 0
    %v146 = vsel %vm120, %v37, 0
    %v149 = vsel %vm120, %v38, 0
    %v152 = vsel %vm120, %v39, 0
    %v155 = vsel %vm120, %v40, 0
    %v158 = vsel %vm120, %v41, 0
    %v161 = vsel %vm120, %v42, 0
    %v164 = vsel %vm120, %v43, 0
    %v167 = vsel %vm120, %v44, 0
    %v170 = vsel %vm120, %v45, 0
    %v173 = vsel %vm120, %v46, 0
    %v176 = vsel %vm120, %v47, 0
    %v179 = vsel %vm120, %v48, 0
    %v182 = vsel %vm120, %v49, 0
    %v185 = vsel %vm120, %v50, 0
    %v188 = vsel %vm120, %v51, 0
    %v191 = vsel %vm120, %v52, 0
    %v194 = vsel %vm120, %v53, 0
    %v197 = vsel %vm120, %v54, 0
    %v200 = vsel %vm120, %v55, 0
    %v203 = vsel %vm120, %v56, 0
    %v206 = vsel %vm120, %v57, 0
    %v209 = vsel %vm120, %v58, 0
    %v212 = vsel %vm120, %v59, 0
    %v215 = vsel %vm120, %v60, 0
    %v218 = vsel %vm120, %v61, 0
    %v221 = vsel %vm120, %v62, 0
    %v224 = vsel %vm120, %v63, 0
    %v227 = vsel %vm120, %v64, 0
    %v230 = vsel %vm120, %v65, 0
    %v233 = vsel %vm120, %v66, 0
    %v236 = vsel %vm120, %v67, 0
    %v239 = vsel %vm120, %v68, 0
    %v242 = vsel %vm120, %v69, 0
    %v245 = vsel %vm120, %v70, 0
    %v248 = vsel %vm120, %v71, 0
    %v251 = vsel %vm120, %v72, 0
    %v254 = vsel %vm120, %v73, 0
    %v257 = vsel %vm120, %v74, 0
    %v260 = vsel %vm120, %v75, 0
    %v263 = vsel %vm120, %v76, 0
    %v266 = vsel %vm120, %v77, 0
    %v269 = vsel %vm120, %v78, 0
    %v272 = vsel %vm120, %v79, 0
    %v275 = vsel %vm120, %v80, 0
    %v278 = vsel %vm120, %v81, 0
    %v281 = vsel %vm120, %v82, 0
    %v284 = vsel %vm120, %v83, 0
    %v287 = vsel %vm120, %v84, 0
    %v290 = vsel %vm120, %v85, 0
    %v293 = vsel %vm120, %v86, 0
    %v296 = vsel %vm120, %v87, 0
    %v299 = vsel %vm120, %v88, 0
    %v302 = vsel %vm120, %v89, 0
    %v305 = vsel %vm120, %v90, 0
    %v308 = vsel %vm120, %v91, 0
    %v311 = vsel %vm120, %v92, 0
    %v314 = vsel %vm120, %v93, 0
    %v317 = vsel %vm120, %v94, 0
    %v320 = vsel %vm120, %v95, 0
    %322 = vmatprep.subr.mxu0 0.0
    %323 = vmatpush1.xpose.msra.mxu0 %v134
    %324 = vmatprep.subr.mxu0 0.0
    %325 = vmatpush1.xpose.msra.mxu0 %v137
    %326 = vmatprep.subr.mxu0 0.0
    %327 = vmatpush1.xpose.msra.mxu0 %v140
    %328 = vmatprep.subr.mxu0 0.0
    %329 = vmatpush1.xpose.msra.mxu0 %v143
    %330 = vmatprep.subr.mxu0 0.0
    %331 = vmatpush1.xpose.msra.mxu0 %v146
    %332 = vmatprep.subr.mxu0 0.0
    %333 = vmatpush1.xpose.msra.mxu0 %v149
    %334 = vmatprep.subr.mxu0 0.0
    %335 = vmatpush1.xpose.msra.mxu0 %v152
    %336 = vmatprep.subr.mxu0 0.0
    %337 = vmatpush1.xpose.msra.mxu0 %v155
    %338 = vmatprep.subr.mxu0 0.0
    %339 = vmatpush1.xpose.msra.mxu0 %v158
    %340 = vmatprep.subr.mxu0 0.0
    %341 = vmatpush1.xpose.msra.mxu0 %v161
    %342 = vmatprep.subr.mxu0 0.0
    %343 = vmatpush1.xpose.msra.mxu0 %v164
    %344 = vmatprep.subr.mxu0 0.0
    %345 = vmatpush1.xpose.msra.mxu0 %v167
    %346 = vmatprep.subr.mxu0 0.0
    %347 = vmatpush1.xpose.msra.mxu0 %v170
    %348 = vmatprep.subr.mxu0 0.0
    %349 = vmatpush1.xpose.msra.mxu0 %v173
    %350 = vmatprep.subr.mxu0 0.0
    %351 = vmatpush1.xpose.msra.mxu0 %v176
    %352 = vmatprep.subr.mxu0 0.0
    %353 = vmatpush1.xpose.msra.mxu0 %v179
    %354 = vmatprep.subr.mxu0 0.0
    %355 = vmatpush1.xpose.msra.mxu0 %v182
    %356 = vmatprep.subr.mxu0 0.0
    %357 = vmatpush1.xpose.msra.mxu0 %v185
    %358 = vmatprep.subr.mxu0 0.0
    %359 = vmatpush1.xpose.msra.mxu0 %v188
    %360 = vmatprep.subr.mxu0 0.0
    %361 = vmatpush1.xpose.msra.mxu0 %v191
    %362 = vmatprep.subr.mxu0 0.0
    %363 = vmatpush1.xpose.msra.mxu0 %v194
    %364 = vmatprep.subr.mxu0 0.0
    %365 = vmatpush1.xpose.msra.mxu0 %v197
    %366 = vmatprep.subr.mxu0 0.0
    %367 = vmatpush1.xpose.msra.mxu0 %v200
    %368 = vmatprep.subr.mxu0 0.0
    %369 = vmatpush1.xpose.msra.mxu0 %v203
    %370 = vmatprep.subr.mxu0 0.0
    %371 = vmatpush1.xpose.msra.mxu0 %v206
    %372 = vmatprep.subr.mxu0 0.0
    %373 = vmatpush1.xpose.msra.mxu0 %v209
    %374 = vmatprep.subr.mxu0 0.0
    %375 = vmatpush1.xpose.msra.mxu0 %v212
    %376 = vmatprep.subr.mxu0 0.0
    %377 = vmatpush1.xpose.msra.mxu0 %v215
    %378 = vmatprep.subr.mxu0 0.0
    %379 = vmatpush1.xpose.msra.mxu0 %v218
    %380 = vmatprep.subr.mxu0 0.0
    %381 = vmatpush1.xpose.msra.mxu0 %v221
    %382 = vmatprep.subr.mxu0 0.0
    %383 = vmatpush1.xpose.msra.mxu0 %v224
    %384 = vmatprep.subr.mxu0 0.0
    %385 = vmatpush1.xpose.msra.mxu0 %v227
    %386 = vmatprep.mubr.f32.mxu0 0.0
    %387 = vmatmul.mubr.f32.gmra.mrb[0].mxu0 %v122
    %v388 = vpop.f32.mrb[0].mxu0
    %v389 = vadd.f32 %v103, %v388
    %v390 = vpop.f32.mrb[0].mxu0
    %v391 = vadd.f32 %v103, %v390
    %392 = vmatprep.mubr.f32.mxu0 0.0
    %393 = vmatmul.mubr.f32.gmra.mrb[0].mxu0 %v125
    %v394 = vpop.f32.mrb[0].mxu0
    %v395 = vadd.f32 %v108, %v394
    %v396 = vpop.f32.mrb[0].mxu0
    %v397 = vadd.f32 %v108, %v396
    %398 = vmatprep.mubr.f32.mxu0 0.0
    %399 = vmatmul.mubr.f32.gmra.mrb[0].mxu0 %v128
    %v400 = vpop.f32.mrb[0].mxu0
    %v401 = vadd.f32 %v113, %v400
    %v402 = vpop.f32.mrb[0].mxu0
    %v403 = vadd.f32 %v113, %v402
    %404 = vmatprep.mubr.f32.mxu0 0.0
    %405 = vmatmul.mubr.f32.gmra.mrb[0].mxu0 %v131
    %v406 = vpop.f32.mrb[0].mxu0
    %v407 = vadd.f32 %v118, %v406
    %v408 = vpop.f32.mrb[0].mxu0
    %v409 = vadd.f32 %v118, %v408
    %410 = vdwg.mxu0
    %411 = vmatprep.subr.mxu0 0.0
    %412 = vmatpush1.xpose.msra.mxu0 %v230
    %413 = vmatprep.subr.mxu0 0.0
    %414 = vmatpush1.xpose.msra.mxu0 %v233
    %415 = vmatprep.subr.mxu0 0.0
    %416 = vmatpush1.xpose.msra.mxu0 %v236
    %417 = vmatprep.subr.mxu0 0.0
    %418 = vmatpush1.xpose.msra.mxu0 %v239
    %419 = vmatprep.subr.mxu0 0.0
    %420 = vmatpush1.xpose.msra.mxu0 %v242
    %421 = vmatprep.subr.mxu0 0.0
    %422 = vmatpush1.xpose.msra.mxu0 %v245
    %423 = vmatprep.subr.mxu0 0.0
    %424 = vmatpush1.xpose.msra.mxu0 %v248
    %425 = vmatprep.subr.mxu0 0.0
    %426 = vmatpush1.xpose.msra.mxu0 %v251
    %427 = vmatprep.subr.mxu0 0.0
    %428 = vmatpush1.xpose.msra.mxu0 %v254
    %429 = vmatprep.subr.mxu0 0.0
    %430 = vmatpush1.xpose.msra.mxu0 %v257
    %431 = vmatprep.subr.mxu0 0.0
    %432 = vmatpush1.xpose.msra.mxu0 %v260
    %433 = vmatprep.subr.mxu0 0.0
    %434 = vmatpush1.xpose.msra.mxu0 %v263
    %435 = vmatprep.subr.mxu0 0.0
    %436 = vmatpush1.xpose.msra.mxu0 %v266
    %437 = vmatprep.subr.mxu0 0.0
    %438 = vmatpush1.xpose.msra.mxu0 %v269
    %439 = vmatprep.subr.mxu0 0.0
    %440 = vmatpush1.xpose.msra.mxu0 %v272
    %441 = vmatprep.subr.mxu0 0.0
    %442 = vmatpush1.xpose.msra.mxu0 %v275
    %443 = vmatprep.subr.mxu0 0.0
    %444 = vmatpush1.xpose.msra.mxu0 %v278
    %445 = vmatprep.subr.mxu0 0.0
    %446 = vmatpush1.xpose.msra.mxu0 %v281
    %447 = vmatprep.subr.mxu0 0.0
    %448 = vmatpush1.xpose.msra.mxu0 %v284
    %449 = vmatprep.subr.mxu0 0.0
    %450 = vmatpush1.xpose.msra.mxu0 %v287
    %451 = vmatprep.subr.mxu0 0.0
    %452 = vmatpush1.xpose.msra.mxu0 %v290
    %453 = vmatprep.subr.mxu0 0.0
    %454 = vmatpush1.xpose.msra.mxu0 %v293
    %455 = vmatprep.subr.mxu0 0.0
    %456 = vmatpush1.xpose.msra.mxu0 %v296
    %457 = vmatprep.subr.mxu0 0.0
    %458 = vmatpush1.xpose.msra.mxu0 %v299
    %459 = vmatprep.subr.mxu0 0.0
    %460 = vmatpush1.xpose.msra.mxu0 %v302
    %461 = vmatprep.subr.mxu0 0.0
    %462 = vmatpush1.xpose.msra.mxu0 %v305
    %463 = vmatprep.subr.mxu0 0.0
    %464 = vmatpush1.xpose.msra.mxu0 %v308
    %465 = vmatprep.subr.mxu0 0.0
    %466 = vmatpush1.xpose.msra.mxu0 %v311
    %467 = vmatprep.subr.mxu0 0.0
    %468 = vmatpush1.xpose.msra.mxu0 %v314
    %469 = vmatprep.subr.mxu0 0.0
    %470 = vmatpush1.xpose.msra.mxu0 %v317
    %471 = vmatprep.subr.mxu0 0.0
    %472 = vmatpush1.xpose.msra.mxu0 %v320
    %473 = vmatprep.subr.mxu0 0.0
    %474 = vmatpush1.xpose.msra.mxu0 0.0
    %475 = vmatprep.mubr.f32.mxu0 0.0
    %476 = vmatmul.mubr.f32.gmra.mrb[0].mxu0 %v122
    %v477 = vpop.f32.mrb[0].mxu0
    %v478 = vadd.f32 %v103, %v477
    %v479 = vpop.f32.mrb[0].mxu0
    %v480 = vadd.f32 %v103, %v479
    %481 = vmatprep.mubr.f32.mxu0 0.0
    %482 = vmatmul.mubr.f32.gmra.mrb[0].mxu0 %v125
    %v483 = vpop.f32.mrb[0].mxu0
    %v484 = vadd.f32 %v108, %v483
    %v485 = vpop.f32.mrb[0].mxu0
    %v486 = vadd.f32 %v108, %v485
    %487 = vmatprep.mubr.f32.mxu0 0.0
    %488 = vmatmul.mubr.f32.gmra.mrb[0].mxu0 %v128
    %v489 = vpop.f32.mrb[0].mxu0
    %v490 = vadd.f32 %v113, %v489
    %v491 = vpop.f32.mrb[0].mxu0
    %v492 = vadd.f32 %v113, %v491
    %493 = vmatprep.mubr.f32.mxu0 0.0
    %494 = vmatmul.mubr.f32.gmra.mrb[0].mxu0 %v131
    %v495 = vpop.f32.mrb[0].mxu0
    %v496 = vadd.f32 %v118, %v495
    %v497 = vpop.f32.mrb[0].mxu0
    %v498 = vadd.f32 %v118, %v497
    %499 = vdwg.mxu0
    %v500 = vtanh.pop %v389
    %v501 = vtanh.pop %v391
    %v502 = vtanh.pop %v478
    %v503 = vtanh.pop %v480
    %v504 = vtanh.pop %v395
    %v505 = vtanh.pop %v397
    %v506 = vtanh.pop %v484
    %v507 = vtanh.pop %v486
    %v508 = vtanh.pop %v401
    %v509 = vtanh.pop %v403
    %v510 = vtanh.pop %v490
    %v511 = vtanh.pop %v492
    %v512 = vtanh.pop %v407
    %v513 = vtanh.pop %v409
    %v514 = vtanh.pop %v496
    %v515 = vtanh.pop %v498
    %v516 = vld [vmem:[%s3] sm:$0xff]
    %v517 = vld [vmem:[%s3 + $0x8] sm:$0xff]
    %v518 = vld [vmem:[%s3 + $0x10] sm:$0xff]
    %v519 = vld [vmem:[%s3 + $0x18] sm:$0xff]
    %v520 = vld [vmem:[%s4] sm:$0xff]
    %v521 = vld [vmem:[%s4 + $0x8] sm:$0xff]
    %v522 = vld [vmem:[%s4 + $0x10] sm:$0xff]
    %v523 = vld [vmem:[%s4 + $0x18] sm:$0xff]
    %525 = vset.pattern.permute.xlu0 0
    %526 = vperm.xlu0 %525, %v520
    %v527 = vpop.permute.xlu0 %526
    %530 = vset.pattern.permute.xlu0 0
    %531 = vperm.xlu0 %530, %v521
    %v532 = vpop.permute.xlu0 %531
    %535 = vset.pattern.permute.xlu0 0
    %536 = vperm.xlu0 %535, %v522
    %v537 = vpop.permute.xlu0 %536
    %540 = vset.pattern.permute.xlu0 0
    %541 = vperm.xlu0 %540, %v523
    %v542 = vpop.permute.xlu0 %541
    %vm544 = vcmask 261120
    %v546 = vsel %vm544, %v516, 0
    %v549 = vsel %vm544, %v517, 0
    %v552 = vsel %vm544, %v518, 0
    %v555 = vsel %vm544, %v519, 0
    %557 = vmatprep.subr.mxu0 %v501
    %558 = vmatpush1.msra.mxu0 %v500
    %559 = vmatprep.subr.mxu0 %v505
    %560 = vmatpush1.msra.mxu0 %v504
    %561 = vmatprep.subr.mxu0 %v509
    %562 = vmatpush1.msra.mxu0 %v508
    %563 = vmatprep.subr.mxu0 %v513
    %564 = vmatpush1.msra.mxu0 %v512
    %565 = vmatprep.subr.mxu0 0.0
    %566 = vmatpush1.msra.mxu0 0.0
    %567 = vmatprep.subr.mxu0 0.0
    %568 = vmatpush1.msra.mxu0 0.0
    %569 = vmatprep.subr.mxu0 0.0
    %570 = vmatpush1.msra.mxu0 0.0
    %571 = vmatprep.subr.mxu0 0.0
    %572 = vmatpush1.msra.mxu0 0.0
    %573 = vmatprep.subr.mxu0 0.0
    %574 = vmatpush1.msra.mxu0 0.0
    %575 = vmatprep.subr.mxu0 0.0
    %576 = vmatpush1.msra.mxu0 0.0
    %577 = vmatprep.subr.mxu0 0.0
    %578 = vmatpush1.msra.mxu0 0.0
    %579 = vmatprep.subr.mxu0 0.0
    %580 = vmatpush1.msra.mxu0 0.0
    %581 = vmatprep.subr.mxu0 0.0
    %582 = vmatpush1.msra.mxu0 0.0
    %583 = vmatprep.subr.mxu0 0.0
    %584 = vmatpush1.msra.mxu0 0.0
    %585 = vmatprep.subr.mxu0 0.0
    %586 = vmatpush1.msra.mxu0 0.0
    %587 = vmatprep.subr.mxu0 0.0
    %588 = vmatpush1.msra.mxu0 0.0
    %589 = vmatprep.subr.mxu0 0.0
    %590 = vmatpush1.msra.mxu0 0.0
    %591 = vmatprep.subr.mxu0 0.0
    %592 = vmatpush1.msra.mxu0 0.0
    %593 = vmatprep.subr.mxu0 0.0
    %594 = vmatpush1.msra.mxu0 0.0
    %595 = vmatprep.subr.mxu0 0.0
    %596 = vmatpush1.msra.mxu0 0.0
    %597 = vmatprep.subr.mxu0 0.0
    %598 = vmatpush1.msra.mxu0 0.0
    %599 = vmatprep.subr.mxu0 0.0
    %600 = vmatpush1.msra.mxu0 0.0
    %601 = vmatprep.subr.mxu0 0.0
    %602 = vmatpush1.msra.mxu0 0.0
    %603 = vmatprep.subr.mxu0 0.0
    %604 = vmatpush1.msra.mxu0 0.0
    %605 = vmatprep.subr.mxu0 0.0
    %606 = vmatpush1.msra.mxu0 0.0
    %607 = vmatprep.subr.mxu0 0.0
    %608 = vmatpush1.msra.mxu0 0.0
    %609 = vmatprep.subr.mxu0 0.0
    %610 = vmatpush1.msra.mxu0 0.0
    %611 = vmatprep.subr.mxu0 0.0
    %612 = vmatpush1.msra.mxu0 0.0
    %613 = vmatprep.subr.mxu0 0.0
    %614 = vmatpush1.msra.mxu0 0.0
    %615 = vmatprep.subr.mxu0 0.0
    %616 = vmatpush1.msra.mxu0 0.0
    %617 = vmatprep.subr.mxu0 0.0
    %618 = vmatpush1.msra.mxu0 0.0
    %619 = vmatprep.subr.mxu0 0.0
    %620 = vmatpush1.msra.mxu0 0.0
    %621 = vmatprep.mubr.f32.mxu0 0.0
    %622 = vmatmul.mubr.f32.gmra.mrb[0].mxu0 %v546
    %v623 = vpop.f32.mrb[0].mxu0
    %v624 = vadd.f32 %v527, %v623
    %v625 = vpop.f32.mrb[0].mxu0
    %v626 = vadd.f32 %v527, %v625
    %627 = vmatprep.mubr.f32.mxu0 0.0
    %628 = vmatmul.mubr.f32.gmra.mrb[0].mxu0 %v549
    %v629 = vpop.f32.mrb[0].mxu0
    %v630 = vadd.f32 %v532, %v629
    %v631 = vpop.f32.mrb[0].mxu0
    %v632 = vadd.f32 %v532, %v631
    %633 = vmatprep.mubr.f32.mxu0 0.0
    %634 = vmatmul.mubr.f32.gmra.mrb[0].mxu0 %v552
    %v635 = vpop.f32.mrb[0].mxu0
    %v636 = vadd.f32 %v537, %v635
    %v637 = vpop.f32.mrb[0].mxu0
    %v638 = vadd.f32 %v537, %v637
    %639 = vmatprep.mubr.f32.mxu0 0.0
    %640 = vmatmul.mubr.f32.gmra.mrb[0].mxu0 %v555
    %v641 = vpop.f32.mrb[0].mxu0
    %v642 = vadd.f32 %v542, %v641
    %v643 = vpop.f32.mrb[0].mxu0
    %v644 = vadd.f32 %v542, %v643
    %645 = vdwg.mxu0
    %646 = vmatprep.subr.mxu0 %v503
    %647 = vmatpush1.msra.mxu0 %v502
    %648 = vmatprep.subr.mxu0 %v507
    %649 = vmatpush1.msra.mxu0 %v506
    %650 = vmatprep.subr.mxu0 %v511
    %651 = vmatpush1.msra.mxu0 %v510
    %652 = vmatprep.subr.mxu0 %v515
    %653 = vmatpush1.msra.mxu0 %v514
    %654 = vmatprep.subr.mxu0 0.0
    %655 = vmatpush1.msra.mxu0 0.0
    %656 = vmatprep.subr.mxu0 0.0
    %657 = vmatpush1.msra.mxu0 0.0
    %658 = vmatprep.subr.mxu0 0.0
    %659 = vmatpush1.msra.mxu0 0.0
    %660 = vmatprep.subr.mxu0 0.0
    %661 = vmatpush1.msra.mxu0 0.0
    %662 = vmatprep.subr.mxu0 0.0
    %663 = vmatpush1.msra.mxu0 0.0
    %664 = vmatprep.subr.mxu0 0.0
    %665 = vmatpush1.msra.mxu0 0.0
    %666 = vmatprep.subr.mxu0 0.0
    %667 = vmatpush1.msra.mxu0 0.0
    %668 = vmatprep.subr.mxu0 0.0
    %669 = vmatpush1.msra.mxu0 0.0
    %670 = vmatprep.subr.mxu0 0.0
    %671 = vmatpush1.msra.mxu0 0.0
    %672 = vmatprep.subr.mxu0 0.0
    %673 = vmatpush1.msra.mxu0 0.0
    %674 = vmatprep.subr.mxu0 0.0
    %675 = vmatpush1.msra.mxu0 0.0
    %676 = vmatprep.subr.mxu0 0.0
    %677 = vmatpush1.msra.mxu0 0.0
    %678 = vmatprep.subr.mxu0 0.0
    %679 = vmatpush1.msra.mxu0 0.0
    %680 = vmatprep.subr.mxu0 0.0
    %681 = vmatpush1.msra.mxu0 0.0
    %682 = vmatprep.subr.mxu0 0.0
    %683 = vmatpush1.msra.mxu0 0.0
    %684 = vmatprep.subr.mxu0 0.0
    %685 = vmatpush1.msra.mxu0 0.0
    %686 = vmatprep.subr.mxu0 0.0
    %687 = vmatpush1.msra.mxu0 0.0
    %688 = vmatprep.subr.mxu0 0.0
    %689 = vmatpush1.msra.mxu0 0.0
    %690 = vmatprep.subr.mxu0 0.0
    %691 = vmatpush1.msra.mxu0 0.0
    %692 = vmatprep.subr.mxu0 0.0
    %693 = vmatpush1.msra.mxu0 0.0
    %694 = vmatprep.subr.mxu0 0.0
    %695 = vmatpush1.msra.mxu0 0.0
    %696 = vmatprep.subr.mxu0 0.0
    %697 = vmatpush1.msra.mxu0 0.0
    %698 = vmatprep.subr.mxu0 0.0
    %699 = vmatpush1.msra.mxu0 0.0
    %700 = vmatprep.subr.mxu0 0.0
    %701 = vmatpush1.msra.mxu0 0.0
    %702 = vmatprep.subr.mxu0 0.0
    %703 = vmatpush1.msra.mxu0 0.0
    %704 = vmatprep.subr.mxu0 0.0
    %705 = vmatpush1.msra.mxu0 0.0
    %706 = vmatprep.subr.mxu0 0.0
    %707 = vmatpush1.msra.mxu0 0.0
    %708 = vmatprep.subr.mxu0 0.0
    %709 = vmatpush1.msra.mxu0 0.0
    %710 = vmatprep.mubr.f32.mxu0 0.0
    %711 = vmatmul.mubr.f32.gmra.mrb[0].mxu0 %v546
    %v712 = vpop.f32.mrb[0].mxu0
    %v713 = vadd.f32 %v527, %v712
    %v714 = vpop.f32.mrb[0].mxu0
    %v715 = vadd.f32 %v527, %v714
    %716 = vmatprep.mubr.f32.mxu0 0.0
    %717 = vmatmul.mubr.f32.gmra.mrb[0].mxu0 %v549
    %v718 = vpop.f32.mrb[0].mxu0
    %v719 = vadd.f32 %v532, %v718
    %v720 = vpop.f32.mrb[0].mxu0
    %v721 = vadd.f32 %v532, %v720
    %722 = vmatprep.mubr.f32.mxu0 0.0
    %723 = vmatmul.mubr.f32.gmra.mrb[0].mxu0 %v552
    %v724 = vpop.f32.mrb[0].mxu0
    %v725 = vadd.f32 %v537, %v724
    %v726 = vpop.f32.mrb[0].mxu0
    %v727 = vadd.f32 %v537, %v726
    %728 = vmatprep.mubr.f32.mxu0 0.0
    %729 = vmatmul.mubr.f32.gmra.mrb[0].mxu0 %v555
    %v730 = vpop.f32.mrb[0].mxu0
    %v731 = vadd.f32 %v542, %v730
    %v732 = vpop.f32.mrb[0].mxu0
    %v733 = vadd.f32 %v542, %v732
    %734 = vdwg.mxu0
    %v735 = vtanh.pop %v624
    %v736 = vtanh.pop %v626
    %v737 = vtanh.pop %v713
    %v738 = vtanh.pop %v715
    %v739 = vtanh.pop %v630
    %v740 = vtanh.pop %v632
    %v741 = vtanh.pop %v719
    %v742 = vtanh.pop %v721
    %v743 = vtanh.pop %v636
    %v744 = vtanh.pop %v638
    %v745 = vtanh.pop %v725
    %v746 = vtanh.pop %v727
    %v747 = vtanh.pop %v642
    %v748 = vtanh.pop %v644
    %v749 = vtanh.pop %v731
    %v750 = vtanh.pop %v733
    %v751 = vld [vmem:[%s5] sm:$0x1]
    %v752 = vld [vmem:[#allocation2] sm:$0x1]
    %754 = vset.pattern.permute.xlu0 0
    %755 = vperm.xlu0 %754, %v752
    %v756 = vpop.permute.xlu0 %755
    %v758 = vlaneseq
    %v759 = vshrl.u32 %v758, 7
    %v760 = vsub.s32 0, %v759
    %v761 = vrot.slane %v756, %v760
    %v763 = vsel %vm544, %v751, 0
    %765 = vmatprep.subr.mxu0 %v736
    %766 = vmatpush1.msra.mxu0 %v735
    %767 = vmatprep.subr.mxu0 %v740
    %768 = vmatpush1.msra.mxu0 %v739
    %769 = vmatprep.subr.mxu0 %v744
    %770 = vmatpush1.msra.mxu0 %v743
    %771 = vmatprep.subr.mxu0 %v748
    %772 = vmatpush1.msra.mxu0 %v747
    %773 = vmatprep.subr.mxu0 0.0
    %774 = vmatpush1.msra.mxu0 0.0
    %775 = vmatprep.subr.mxu0 0.0
    %776 = vmatpush1.msra.mxu0 0.0
    %777 = vmatprep.subr.mxu0 0.0
    %778 = vmatpush1.msra.mxu0 0.0
    %779 = vmatprep.subr.mxu0 0.0
    %780 = vmatpush1.msra.mxu0 0.0
    %781 = vmatprep.subr.mxu0 0.0
    %782 = vmatpush1.msra.mxu0 0.0
    %783 = vmatprep.subr.mxu0 0.0
    %784 = vmatpush1.msra.mxu0 0.0
    %785 = vmatprep.subr.mxu0 0.0
    %786 = vmatpush1.msra.mxu0 0.0
    %787 = vmatprep.subr.mxu0 0.0
    %788 = vmatpush1.msra.mxu0 0.0
    %789 = vmatprep.subr.mxu0 0.0
    %790 = vmatpush1.msra.mxu0 0.0
    %791 = vmatprep.subr.mxu0 0.0
    %792 = vmatpush1.msra.mxu0 0.0
    %793 = vmatprep.subr.mxu0 0.0
    %794 = vmatpush1.msra.mxu0 0.0
    %795 = vmatprep.subr.mxu0 0.0
    %796 = vmatpush1.msra.mxu0 0.0
    %797 = vmatprep.subr.mxu0 0.0
    %798 = vmatpush1.msra.mxu0 0.0
    %799 = vmatprep.subr.mxu0 0.0
    %800 = vmatpush1.msra.mxu0 0.0
    %801 = vmatprep.subr.mxu0 0.0
    %802 = vmatpush1.msra.mxu0 0.0
    %803 = vmatprep.subr.mxu0 0.0
    %804 = vmatpush1.msra.mxu0 0.0
    %805 = vmatprep.subr.mxu0 0.0
    %806 = vmatpush1.msra.mxu0 0.0
    %807 = vmatprep.subr.mxu0 0.0
    %808 = vmatpush1.msra.mxu0 0.0
    %809 = vmatprep.subr.mxu0 0.0
    %810 = vmatpush1.msra.mxu0 0.0
    %811 = vmatprep.subr.mxu0 0.0
    %812 = vmatpush1.msra.mxu0 0.0
    %813 = vmatprep.subr.mxu0 0.0
    %814 = vmatpush1.msra.mxu0 0.0
    %815 = vmatprep.subr.mxu0 0.0
    %816 = vmatpush1.msra.mxu0 0.0
    %817 = vmatprep.subr.mxu0 0.0
    %818 = vmatpush1.msra.mxu0 0.0
    %819 = vmatprep.subr.mxu0 0.0
    %820 = vmatpush1.msra.mxu0 0.0
    %821 = vmatprep.subr.mxu0 0.0
    %822 = vmatpush1.msra.mxu0 0.0
    %823 = vmatprep.subr.mxu0 0.0
    %824 = vmatpush1.msra.mxu0 0.0
    %825 = vmatprep.subr.mxu0 0.0
    %826 = vmatpush1.msra.mxu0 0.0
    %827 = vmatprep.subr.mxu0 0.0
    %828 = vmatpush1.msra.mxu0 0.0
    %829 = vmatprep.mubr.f32.mxu0 0.0
    %830 = vmatmul.mubr.f32.gmra.mrb[0].mxu0 %v763
    %v831 = vpop.f32.mrb[0].mxu0
    %v832 = vadd.f32 %v761, %v831
    %v833 = vpop.f32.mrb[0].mxu0
    %v834 = vadd.f32 %v761, %v833
    %835 = vdwg.mxu0
    %836 = vmatprep.subr.mxu0 %v738
    %837 = vmatpush1.msra.mxu0 %v737
    %838 = vmatprep.subr.mxu0 %v742
    %839 = vmatpush1.msra.mxu0 %v741
    %840 = vmatprep.subr.mxu0 %v746
    %841 = vmatpush1.msra.mxu0 %v745
    %842 = vmatprep.subr.mxu0 %v750
    %843 = vmatpush1.msra.mxu0 %v749
    %844 = vmatprep.subr.mxu0 0.0
    %845 = vmatpush1.msra.mxu0 0.0
    %846 = vmatprep.subr.mxu0 0.0
    %847 = vmatpush1.msra.mxu0 0.0
    %848 = vmatprep.subr.mxu0 0.0
    %849 = vmatpush1.msra.mxu0 0.0
    %850 = vmatprep.subr.mxu0 0.0
    %851 = vmatpush1.msra.mxu0 0.0
    %852 = vmatprep.subr.mxu0 0.0
    %853 = vmatpush1.msra.mxu0 0.0
    %854 = vmatprep.subr.mxu0 0.0
    %855 = vmatpush1.msra.mxu0 0.0
    %856 = vmatprep.subr.mxu0 0.0
    %857 = vmatpush1.msra.mxu0 0.0
    %858 = vmatprep.subr.mxu0 0.0
    %859 = vmatpush1.msra.mxu0 0.0
    %860 = vmatprep.subr.mxu0 0.0
    %861 = vmatpush1.msra.mxu0 0.0
    %862 = vmatprep.subr.mxu0 0.0
    %863 = vmatpush1.msra.mxu0 0.0
    %864 = vmatprep.subr.mxu0 0.0
    %865 = vmatpush1.msra.mxu0 0.0
    %866 = vmatprep.subr.mxu0 0.0
    %867 = vmatpush1.msra.mxu0 0.0
    %868 = vmatprep.subr.mxu0 0.0
    %869 = vmatpush1.msra.mxu0 0.0
    %870 = vmatprep.subr.mxu0 0.0
    %871 = vmatpush1.msra.mxu0 0.0
    %872 = vmatprep.subr.mxu0 0.0
    %873 = vmatpush1.msra.mxu0 0.0
    %874 = vmatprep.subr.mxu0 0.0
    %875 = vmatpush1.msra.mxu0 0.0
    %876 = vmatprep.subr.mxu0 0.0
    %877 = vmatpush1.msra.mxu0 0.0
    %878 = vmatprep.subr.mxu0 0.0
    %879 = vmatpush1.msra.mxu0 0.0
    %880 = vmatprep.subr.mxu0 0.0
    %881 = vmatpush1.msra.mxu0 0.0
    %882 = vmatprep.subr.mxu0 0.0
    %883 = vmatpush1.msra.mxu0 0.0
    %884 = vmatprep.subr.mxu0 0.0
    %885 = vmatpush1.msra.mxu0 0.0
    %886 = vmatprep.subr.mxu0 0.0
    %887 = vmatpush1.msra.mxu0 0.0
    %888 = vmatprep.subr.mxu0 0.0
    %889 = vmatpush1.msra.mxu0 0.0
    %890 = vmatprep.subr.mxu0 0.0
    %891 = vmatpush1.msra.mxu0 0.0
    %892 = vmatprep.subr.mxu0 0.0
    %893 = vmatpush1.msra.mxu0 0.0
    %894 = vmatprep.subr.mxu0 0.0
    %895 = vmatpush1.msra.mxu0 0.0
    %896 = vmatprep.subr.mxu0 0.0
    %897 = vmatpush1.msra.mxu0 0.0
    %898 = vmatprep.subr.mxu0 0.0
    %899 = vmatpush1.msra.mxu0 0.0
    %900 = vmatprep.mubr.f32.mxu0 0.0
    %901 = vmatmul.mubr.f32.gmra.mrb[0].mxu0 %v763
    %v902 = vpop.f32.mrb[0].mxu0
    %v903 = vadd.f32 %v761, %v902
    %v904 = vpop.f32.mrb[0].mxu0
    %v905 = vadd.f32 %v761, %v904
    %906 = vdwg.mxu0
    %v911 = vcombine.low %v832, %v834
    %v912 = vcombine.low %v903, %v905
    %v914 = vunpack.c.l.s4 1966171168
    %v915 = vunpack.c.0.s8 %v914
    %v916 = vlaneseq
    %v917 = vshrl.u32 %v916, 7
    %v918 = vsub.s32 %v915, %v917
    %v919 = vrot.slane %v911, %v918
    %v921 = vunpack.c.l.s4 1966171168
    %v922 = vunpack.c.0.s8 %v921
    %v923 = vlaneseq
    %v924 = vshrl.u32 %v923, 7
    %v925 = vsub.s32 %v922, %v924
    %v926 = vrot.slane %v912, %v925
    %v927 = vcombine.low %v919, %v926
    %v929 = vunpack.c.l.s4 1966171168
    %v930 = vunpack.c.0.s8 %v929
    %v931 = vlaneseq
    %v932 = vshrl.u32 %v931, 7
    %v933 = vsub.s32 %v930, %v932
    %v934 = vrot.slane %v927, %v933
    %v936 = vlaneseq
    %vm937 = vcmp.ge.s32.totalorder %v936, 0
    %vm938 = vcmp.lt.s32.totalorder %v936, 500
    %vm939 = vmand %vm937, %vm938
    %940 = vst.msk [vmem:[#allocation3] sm:$0xf] %vm939, %v934
    // Predicated region
    $region30: #{tpu_custom_call.1} parent=1 // pred_check
      _
    $region31: #{tpu_custom_call.1} parent=1 // pred_check_branch
      %942 = sbr.rel (0) target = $region33
    $region32: #{tpu_custom_call.1} parent=1 // pred_region
      %s944 = ssub.s32 64, 64
      %945 = vsyncadd [#allocation4], %s944
      %s947 = sshll.u32 [#allocation3], 4
      %s948 = int_to_ptr.vmem [resolvable:$true] %s947
      %950 = dma.vmem_to_hbm [thread:$0]  %s948, 64, %s7, [#allocation4]
    $region33: #{tpu_custom_call.1} parent=1 // pred_fallthru
      _
    // Predicated region
    $region34: #{tpu_custom_call.1} parent=1 // pred_check
      _
    $region35: #{tpu_custom_call.1} parent=1 // pred_check_branch
      %952 = sbr.rel (0) target = $region37
    $region36: #{tpu_custom_call.1} parent=1 // pred_region
      %953 = dma.done [#allocation4], 64
    $region37: #{tpu_custom_call.1} parent=1 // pred_fallthru
      _
    %954 = vsyncpa [#allocation4], 1

</llo_original>
